<compile_context>
chip_gen: v7x
topology: tpu7x:2x2x1
jax: 0.10.0
libtpu: 0.0.40
codegen_flags: <defaults>
</compile_context>

<pallas_src>
import jax
import jax.numpy as jnp
from jax.experimental import pallas as pl
from jax.experimental.pallas import tpu as pltpu

BLOCKS = [
    'text_model', 'unet_down_blocks_0_attentions_0',
    'unet_down_blocks_0_attentions_1', 'unet_down_blocks_1_attentions_0',
    'unet_down_blocks_1_attentions_1', 'unet_down_blocks_2_attentions_0',
    'unet_down_blocks_2_attentions_1', 'unet_mid_block_attentions_0',
    'unet_up_blocks_1_attentions_0', 'unet_up_blocks_1_attentions_1',
    'unet_up_blocks_1_attentions_2', 'unet_up_blocks_2_attentions_0',
    'unet_up_blocks_2_attentions_1', 'unet_up_blocks_2_attentions_2',
    'unet_up_blocks_3_attentions_0', 'unet_up_blocks_3_attentions_1',
    'unet_up_blocks_3_attentions_2',
]


# ---------------------------------------------------------------------------
# Tiling / VMEM helpers
# ---------------------------------------------------------------------------
def _round_up(x, m):
    return ((x + m - 1) // m) * m


def _pick_tm(M):
    # 512 rows halves W_eff re-streaming vs 256 and still fits VMEM comfortably
    # at K,tn ~ 1280,1024; small-M path rounds to 16 (bf16 packs 16 sublanes).
    if M >= 512:
        return 512
    if M >= 256:
        return 256
    return _round_up(M, 16)


def _pick_tiles(M, N):
    tm = _pick_tm(M)
    # Lane-dense output tile; block == full dim is always legal for small N.
    tn = N if N <= 1024 else 512
    # v7x: a 1x1 grid leaves one TensorCore idle -> split N when it is big
    # enough to make two lane-dense tiles.
    if pl.cdiv(M, tm) == 1 and pl.cdiv(N, tn) == 1 and N >= 256:
        tn = _round_up(pl.cdiv(N, 2), 128)
    return tm, tn


def _vmem_cap_bytes():
    # ~5/8 of physical VMEM: 40 MiB on v7x (64 MiB/TC), 80 MiB on v5e/v6e.
    try:
        cap = getattr(pltpu.get_tpu_info(), "vmem_capacity_bytes", None)
        if cap:
            return int(cap) * 5 // 8
    except Exception:
        pass
    return 40 * 1024 * 1024


# ---------------------------------------------------------------------------
# Pallas kernel:  o = x @ W_eff + b     (LoRA already merged into W_eff)
# ---------------------------------------------------------------------------
def _merged_matmul_kernel(x_ref, w_ref, b_ref, o_ref):
    # In-kernel cast to the weight dtype (bf16): VPU work hidden under the MXU,
    # avoids a separate full-HBM-pass astype op in the wrapper.
    x = x_ref[...].astype(w_ref.dtype)
    acc = jnp.dot(x, w_ref[...], preferred_element_type=jnp.float32)  # f32 acc
    o_ref[...] = (acc + b_ref[...]).astype(o_ref.dtype)


def merged_lora_matmul(x2d, w_eff, bias, *, out_dtype=None):
    """x2d: (M, K) any float dtype; w_eff: (K, N) bf16 with LoRA pre-merged;
    bias: (1, N) f32. Returns (M, N) in out_dtype (default: x2d.dtype)."""
    M, K = x2d.shape
    Kw, N = w_eff.shape
    assert Kw == K
    out_dtype = out_dtype if out_dtype is not None else x2d.dtype

    tm, tn = _pick_tiles(M, N)
    grid = (pl.cdiv(M, tm), pl.cdiv(N, tn))   # ragged tiles masked by Pallas

    # Double-buffered tile footprint + headroom, clamped to the per-gen cap.
    xb = jnp.dtype(x2d.dtype).itemsize
    wb = jnp.dtype(w_eff.dtype).itemsize
    ob = jnp.dtype(out_dtype).itemsize
    need = 2 * (tm * K * xb + K * tn * wb + tn * 4 + tm * tn * ob)
    vmem_limit = int(min(_vmem_cap_bytes(),
                         max(32 * 1024 * 1024, need + 4 * 1024 * 1024)))

    return pl.pallas_call(
        _merged_matmul_kernel,
        out_shape=jax.ShapeDtypeStruct((M, N), out_dtype),
        grid_spec=pltpu.PrefetchScalarGridSpec(
            num_scalar_prefetch=0,
            grid=grid,
            in_specs=[
                pl.BlockSpec((tm, K), lambda i, j: (i, 0)),   # activation rows
                pl.BlockSpec((K, tn), lambda i, j: (0, j)),   # merged weight tile
                pl.BlockSpec((1, tn), lambda i, j: (0, j)),   # bias tile
            ],
            out_specs=pl.BlockSpec((tm, tn), lambda i, j: (i, j)),
        ),
        compiler_params=pltpu.CompilerParams(
            dimension_semantics=("parallel", "parallel"),
            vmem_limit_bytes=vmem_limit),
    )(x2d, w_eff, bias)


# ---------------------------------------------------------------------------
# Module-equivalent wrappers (parameter setup / merge / reshapes in plain JAX)
# ---------------------------------------------------------------------------
def _block_ratio(lora_name, lora_block_weights):
    ratio = 1
    if lora_block_weights is not None:
        for i, block in enumerate(BLOCKS):
            if block in lora_name:
                ratio = int(lora_block_weights[i])
    return ratio


class _PretrainedLoRABase:
    """Shared init: builds f32 master weights and the pre-merged bf16 W_eff."""

    def __init__(self, lora_name, in_dim, out_dim, key, multiplier, lora_dim,
                 alpha, lora_block_weights, out_dtype):
        ratio = _block_ratio(lora_name, lora_block_weights)
        alpha = lora_dim if (alpha is None or alpha == 0) else alpha
        self.scale = alpha / lora_dim
        self.multiplier = multiplier * ratio
        self.coeff = self.multiplier * self.scale
        self.out_dtype = out_dtype

        k = jax.random.split(key, 4)
        # f32 masters (stand-ins for the torch pretrained weights), stored
        # transposed for x @ W (torch keeps (out, in)).
        self.w_org = jax.random.normal(k[0], (in_dim, out_dim), jnp.float32) * 0.05
        self.bias = jax.random.normal(k[1], (1, out_dim), jnp.float32) * 0.01
        self.w_down = jax.random.normal(k[2], (in_dim, lora_dim), jnp.float32) * 0.05
        self.w_up = jax.random.normal(k[3], (lora_dim, out_dim), jnp.float32) * 0.05
        # Inference-time pre-merge (same math as PretrainedLoRAModule.merge_to):
        # merged in f32, stored bf16 for half the weight HBM/VMEM traffic.
        self.w_eff = (self.w_org
                      + self.coeff * (self.w_down @ self.w_up)).astype(jnp.bfloat16)

    def _forward_2d(self, x2d):
        return merged_lora_matmul(x2d, self.w_eff, self.bias,
                                  out_dtype=self.out_dtype)


class PretrainedLoRALinear(_PretrainedLoRABase):
    """org_module == nn.Linear(in_features, out_features)."""

    def __init__(self, lora_name, in_features, out_features, key,
                 multiplier=1.0, lora_dim=4, alpha=1, lora_block_weights=None,
                 out_dtype=jnp.bfloat16):
        super().__init__(lora_name, in_features, out_features, key, multiplier,
                         lora_dim, alpha, lora_block_weights, out_dtype)

    def __call__(self, x):
        lead = x.shape[:-1]
        x2d = x.reshape(-1, x.shape[-1])
        out = self._forward_2d(x2d)
        return out.reshape(*lead, out.shape[-1])


class PretrainedLoRAConv1x1(_PretrainedLoRABase):
    """org_module == nn.Conv2d(in_ch, out_ch, kernel_size=(1,1)) (pointwise)."""

    def __init__(self, lora_name, in_ch, out_ch, key,
                 multiplier=1.0, lora_dim=4, alpha=1, lora_block_weights=None,
                 out_dtype=jnp.bfloat16):
        super().__init__(lora_name, in_ch, out_ch, key, multiplier,
                         lora_dim, alpha, lora_block_weights, out_dtype)

    def __call__(self, x_nchw):
        # NCHW -> NHWC -> (N*H*W, C_in) for the kernel, back afterwards.
        # TODO(synk): skip the NCHW<->NHWC round trip when the surrounding
        #             model can stay channels-last end to end.
        N, C, H, W = x_nchw.shape
        x2d = jnp.transpose(x_nchw, (0, 2, 3, 1)).reshape(N * H * W, C)
        out = self._forward_2d(x2d)
        C_out = out.shape[-1]
        return jnp.transpose(out.reshape(N, H, W, C_out), (0, 3, 1, 2))


# ---------------------------------------------------------------------------
# Reference: the *separable* forward in f32 (matches the PyTorch module math)
# ---------------------------------------------------------------------------
def _ref_separable(x2d, w_org, bias, w_down, w_up, coeff):
    base = x2d @ w_org + bias
    lora = (x2d @ w_down) @ w_up
    return base + coeff * lora


if __name__ == "__main__":
    key = jax.random.PRNGKey(0)
    k_lin_w, k_lin_x, k_conv_w, k_conv_x, k_rag_x = jax.random.split(key, 5)

    # Block-weight ratio: 'unet_up_blocks_1_attentions_0' is index 8 -> ratio 2.
    lora_block_weights = [1] * len(BLOCKS)
    lora_block_weights[8] = 2

    TOL = dict(atol=2e-2, rtol=2e-2)   # bf16 weight/activation precision path

    # ----- Linear org_module case: batch=2, seq=8, in=32, out=32 -----
    lin = PretrainedLoRALinear(
        "lora_unet_up_blocks_1_attentions_0_proj_in",
        in_features=32, out_features=32, key=k_lin_w,
        multiplier=1.0, lora_dim=4, alpha=1,
        lora_block_weights=lora_block_weights)
    x_lin = jax.random.normal(k_lin_x, (2, 8, 32), jnp.float32)
    y_lin = jax.block_until_ready(lin(x_lin))
    y_lin_ref = _ref_separable(x_lin.reshape(-1, 32), lin.w_org, lin.bias,
                               lin.w_down, lin.w_up, lin.coeff).reshape(2, 8, 32)
    assert y_lin.shape == (2, 8, 32)
    assert jnp.allclose(y_lin.astype(jnp.float32), y_lin_ref, **TOL)

    # ----- Ragged row count (exercises cdiv-masked last row tile): seq=7 -----
    x_rag = jax.random.normal(k_rag_x, (2, 7, 32), jnp.float32)
    y_rag = jax.block_until_ready(lin(x_rag))
    y_rag_ref = _ref_separable(x_rag.reshape(-1, 32), lin.w_org, lin.bias,
                               lin.w_down, lin.w_up, lin.coeff).reshape(2, 7, 32)
    assert y_rag.shape == (2, 7, 32)
    assert jnp.allclose(y_rag.astype(jnp.float32), y_rag_ref, **TOL)

    # ----- Conv2d(1x1) org_module case: NCHW x = (2, 8, 4, 4), out_ch=16 -----
    conv = PretrainedLoRAConv1x1(
        "lora_unet_mid_block_attentions_0_proj_out",
        in_ch=8, out_ch=16, key=k_conv_w,
        multiplier=1.0, lora_dim=4, alpha=1,
        lora_block_weights=lora_block_weights)
    x_conv = jax.random.normal(k_conv_x, (2, 8, 4, 4), jnp.float32)
    y_conv = jax.block_until_ready(conv(x_conv))
    x2d = jnp.transpose(x_conv, (0, 2, 3, 1)).reshape(-1, 8)
    y_conv_ref = jnp.transpose(
        _ref_separable(x2d, conv.w_org, conv.bias, conv.w_down, conv.w_up,
                       conv.coeff).reshape(2, 4, 4, 16), (0, 3, 1, 2))
    assert y_conv.shape == (2, 16, 4, 4)
    assert jnp.allclose(y_conv.astype(jnp.float32), y_conv_ref, **TOL)

    print("KERNEL_OK")
</pallas_src>

<mosaic_0001>
module attributes {stable_mosaic.version = 11 : i64} {
  func.func @_merged_matmul_kernel(%arg0: i32, %arg1: i32, %arg2: memref<16x32xf32, #tpu.memory_space<vmem>>, %arg3: memref<32x32xbf16, #tpu.memory_space<vmem>>, %arg4: memref<1x32xf32, #tpu.memory_space<vmem>>, %arg5: memref<16x32xbf16, #tpu.memory_space<vmem>>) attributes {dimension_semantics = [#tpu.dimension_semantics<parallel>, #tpu.dimension_semantics<parallel>], iteration_bounds = array<i64: 1, 1>, scalar_prefetch = 0 : i64, scratch_operands = 0 : i64, tpu.core_type = #tpu.core_type<tc>, window_params = [{transform_indices = @transform_0, window_bounds = array<i64: 16, 32>}, {transform_indices = @transform_1, window_bounds = array<i64: 32, 32>}, {transform_indices = @transform_2, window_bounds = array<i64: 1, 32>}, {transform_indices = @transform_3, window_bounds = array<i64: 16, 32>}]} {
    %c0 = arith.constant 0 : index
    %c0_0 = arith.constant 0 : index
    %0 = vector.load %arg2[%c0, %c0_0] : memref<16x32xf32, #tpu.memory_space<vmem>>, vector<16x32xf32>
    %1 = arith.truncf %0 : vector<16x32xf32> to vector<16x32xbf16>
    %c0_1 = arith.constant 0 : index
    %c0_2 = arith.constant 0 : index
    %2 = vector.load %arg3[%c0_1, %c0_2] : memref<32x32xbf16, #tpu.memory_space<vmem>>, vector<32x32xbf16>
    %cst = arith.constant dense<0.000000e+00> : vector<16x32xf32>
    %3 = tpu.matmul %1, %2, %cst {dimension_numbers = #tpu.dot_dimension_numbers<[1], [0], [0], [1], [0, 0, 1, 1], [], []>} : vector<16x32xbf16>, vector<32x32xbf16>, vector<16x32xf32> -> vector<16x32xf32>
    %c0_3 = arith.constant 0 : index
    %c0_4 = arith.constant 0 : index
    %4 = vector.load %arg4[%c0_3, %c0_4] : memref<1x32xf32, #tpu.memory_space<vmem>>, vector<1x32xf32>
    %5 = vector.broadcast %4 : vector<1x32xf32> to vector<16x32xf32>
    %6 = arith.addf %3, %5 : vector<16x32xf32>
    %7 = arith.truncf %6 : vector<16x32xf32> to vector<16x32xbf16>
    %c0_5 = arith.constant 0 : index
    %c0_6 = arith.constant 0 : index
    %8 = vector.load %arg5[%c0_5, %c0_6] : memref<16x32xbf16, #tpu.memory_space<vmem>>, vector<16x32xbf16>
    tpu.vector_store %arg5[%c0_5, %c0_6], %7 {strides = array<i32>} : memref<16x32xbf16, #tpu.memory_space<vmem>>, vector<16x32xbf16>,
    return
  }
  func.func @transform_0(%arg0: i32, %arg1: i32) -> (i32, i32) {
    %c0_i32 = arith.constant 0 : i32
    %c0_i32_0 = arith.constant 0 : i32
    return %arg0, %c0_i32 : i32, i32
  }
  func.func @transform_1(%arg0: i32, %arg1: i32) -> (i32, i32) {
    %c0_i32 = arith.constant 0 : i32
    %c0_i32_0 = arith.constant 0 : i32
    return %c0_i32, %arg1 : i32, i32
  }
  func.func @transform_2(%arg0: i32, %arg1: i32) -> (i32, i32) {
    %c0_i32 = arith.constant 0 : i32
    %c0_i32_0 = arith.constant 0 : i32
    return %c0_i32, %arg1 : i32, i32
  }
  func.func @transform_3(%arg0: i32, %arg1: i32) -> (i32, i32) {
    %c0_i32 = arith.constant 0 : i32
    return %arg0, %arg1 : i32, i32
  }
}

</mosaic_0001>

<llo_original>
// kernel: tpu_custom_call.1
$region0: #{tpu_custom_call.1}
  #allocation0 [shape = 'u32[]', space=smem, size = 0x4, offset = 0x4, fixed_abs, tag = 'smem constant byte address 0x4 - core index']
  #allocation1 [shape = 'u32[144,128]{1,0:T(1,128)}', space=vmem, size = 0x12000, scoped, tag = 'internal scratch']
  %s0 = inlined_call_operand.hbm [shape: f32[16,32], index: 0, kind: input, shape index: {}]
  %s1 = inlined_call_operand.hbm [shape: bf16[32,32], index: 1, kind: input, shape index: {}]
  %s2 = inlined_call_operand.vmem [shape: f32[1,32], index: 2, kind: input, shape index: {}]
  %s3 = inlined_call_operand.hbm [shape: bf16[16,32], index: 3, kind: output, shape index: {}]
  %s4 = sld [smem:[#allocation0]]
  $region30: #{tpu_custom_call.1} parent=0
    _
  %s6 = ssub.s32 1, %s4
  %s7 = scalar_select 0, %s6, %s4
  $region1: #{tpu_custom_call.1} parent=0
    #allocation2 [shape = 'u8[8192]{0}', space=vmem, size = 0x2000, scoped, tag = 'input window, operand 0, single buffered']
    #allocation3 [shape = 's32[1]{0}', space=sflag, size = 0x4, scoped, tag = 'scoped memory for tpu_custom_call.1']
    #allocation4 [shape = 's32[1]{0}', space=sflag, size = 0x4, scoped, tag = 'scoped memory for tpu_custom_call.1']
    #allocation5 [shape = 'u8[8192]{0}', space=vmem, size = 0x2000, scoped, tag = 'input window, operand 1, single buffered']
    #allocation6 [shape = 's32[1]{0}', space=sflag, size = 0x4, scoped, tag = 'scoped memory for tpu_custom_call.1']
    #allocation7 [shape = 'u8[4096]{0}', space=vmem, size = 0x1000, scoped, tag = 'output window, operand 0, single buffered']
    %8 = vsyncpa [#allocation3], 0
    %9 = vsyncpa [#allocation6], 0
    %10 = vsyncpa [#allocation4], 0
    // Predicated region
    $region2: #{tpu_custom_call.1} parent=1 // pred_check
      _
    $region3: #{tpu_custom_call.1} parent=1 // pred_check_branch
      %12 = sbr.rel (0) target = $region5
    $region4: #{tpu_custom_call.1} parent=1 // pred_region
      %s14 = ssub.s32 256, 256
      %15 = vsyncadd [#allocation3], %s14
      %s16 = sshll.u32 [#allocation2], 4
      %s17 = int_to_ptr.vmem [resolvable:$true] %s16
      %22 = dma.hbm_to_vmem [thread:$0]  %s0, 256, %s17, [#allocation3], 128, 128, 8
    $region5: #{tpu_custom_call.1} parent=1 // pred_fallthru
      _
    // Predicated region
    $region6: #{tpu_custom_call.1} parent=1 // pred_check
      _
    $region7: #{tpu_custom_call.1} parent=1 // pred_check_branch
      %24 = sbr.rel (0) target = $region9
    $region8: #{tpu_custom_call.1} parent=1 // pred_region
      %s26 = ssub.s32 256, 256
      %27 = vsyncadd [#allocation6], %s26
      %s28 = sshll.u32 [#allocation5], 4
      %s29 = int_to_ptr.vmem [resolvable:$true] %s28
      %34 = dma.hbm_to_vmem [thread:$0]  %s1, 256, %s29, [#allocation6], 64, 64, 4
    $region9: #{tpu_custom_call.1} parent=1 // pred_fallthru
      _
    // Predicated region
    $region10: #{tpu_custom_call.1} parent=1 // pred_check
      _
    $region11: #{tpu_custom_call.1} parent=1 // pred_check_branch
      %36 = sbr.rel (0) target = $region13
    $region12: #{tpu_custom_call.1} parent=1 // pred_region
      _
    $region13: #{tpu_custom_call.1} parent=1 // pred_fallthru
      _
    // Predicated region
    $region14: #{tpu_custom_call.1} parent=1 // pred_check
      _
    $region15: #{tpu_custom_call.1} parent=1 // pred_check_branch
      %38 = sbr.rel (0) target = $region17
    $region16: #{tpu_custom_call.1} parent=1 // pred_region
      %39 = dma.done [#allocation3], 256
    $region17: #{tpu_custom_call.1} parent=1 // pred_fallthru
      _
    // Predicated region
    $region18: #{tpu_custom_call.1} parent=1 // pred_check
      _
    $region19: #{tpu_custom_call.1} parent=1 // pred_check_branch
      %41 = sbr.rel (0) target = $region21
    $region20: #{tpu_custom_call.1} parent=1 // pred_region
      %42 = dma.done [#allocation6], 256
    $region21: #{tpu_custom_call.1} parent=1 // pred_fallthru
      _
    %v44 = vld [vmem:[#allocation2] sm:$0xff]
    %v45 = vld [vmem:[#allocation2 + $0x8] sm:$0xff]
    %v46 = vpack.c.bf16 %v45, %v44
    %v47 = vld [vmem:[#allocation5] sm:$0xf]
    %v48 = vld [vmem:[#allocation5 + $0x4] sm:$0xf]
    %v49 = vld [vmem:[#allocation5 + $0x8] sm:$0xf]
    %v50 = vld [vmem:[#allocation5 + $0xc] sm:$0xf]
    %v51 = vld [vmem:[%s2] sm:$0x1]
    %v53 = vlaneseq
    %v54 = vshrl.u32 %v53, 7
    %v55 = vsub.s32 0, %v54
    %v56 = vrot.slane %v51, %v55
    %v62 = vunpack.c.l.b16 %v47
    %v63 = vunpack.c.l.b16 %v48
    %v64 = vunpack.c.l.b16 %v49
    %v65 = vunpack.c.l.b16 %v50
    %v66 = vpack.c.b16 %v63, %v62
    %v67 = vpack.c.b16 %v65, %v64
    %vm70 = vcmask 261120
    %v72 = vsel %vm70, %v46, 0
    %74 = vmatprep.subr.bf16.mxu0 0
    %75 = vmatpush1.bf16.msra.mxu0 %v66
    %76 = vmatprep.subr.bf16.mxu0 0
    %77 = vmatpush1.bf16.msra.mxu0 %v67
    %78 = vmatprep.subr.bf16.mxu0 0
    %79 = vmatpush1.bf16.msra.mxu0 0
    %80 = vmatprep.subr.bf16.mxu0 0
    %81 = vmatpush1.bf16.msra.mxu0 0
    %82 = vmatprep.subr.bf16.mxu0 0
    %83 = vmatpush1.bf16.msra.mxu0 0
    %84 = vmatprep.subr.bf16.mxu0 0
    %85 = vmatpush1.bf16.msra.mxu0 0
    %86 = vmatprep.subr.bf16.mxu0 0
    %87 = vmatpush1.bf16.msra.mxu0 0
    %88 = vmatprep.subr.bf16.mxu0 0
    %89 = vmatpush1.bf16.msra.mxu0 0
    %90 = vmatprep.subr.bf16.mxu0 0
    %91 = vmatpush1.bf16.msra.mxu0 0
    %92 = vmatprep.subr.bf16.mxu0 0
    %93 = vmatpush1.bf16.msra.mxu0 0
    %94 = vmatprep.subr.bf16.mxu0 0
    %95 = vmatpush1.bf16.msra.mxu0 0
    %96 = vmatprep.subr.bf16.mxu0 0
    %97 = vmatpush1.bf16.msra.mxu0 0
    %98 = vmatprep.subr.bf16.mxu0 0
    %99 = vmatpush1.bf16.msra.mxu0 0
    %100 = vmatprep.subr.bf16.mxu0 0
    %101 = vmatpush1.bf16.msra.mxu0 0
    %102 = vmatprep.subr.bf16.mxu0 0
    %103 = vmatpush1.bf16.msra.mxu0 0
    %104 = vmatprep.subr.bf16.mxu0 0
    %105 = vmatpush1.bf16.msra.mxu0 0
    %106 = vmatprep.mubr.bf16.mxu0 0
    %107 = vmatmul.mubr.bf16.gmra.mrb[0].mxu0 %v72
    %v108 = vpop.f32.mrb[0].mxu0
    %v109 = vadd.f32 %v56, %v108
    %v110 = vpop.f32.mrb[0].mxu0
    %v111 = vpop.f32.mrb[0].mxu0
    %v112 = vadd.f32 %v56, %v111
    %v113 = vpop.f32.mrb[0].mxu0
    %114 = vdwg.mxu0
    %v115 = vpack.c.bf16 %v112, %v109
    %v117 = vunpack.c.l.b16 %v115
    %v118 = vunpack.c.h.b16 %v115
    %v119 = vpack.c.b16 %v117, %v117
    %v120 = vpack.c.b16 %v118, %v118
    %vm123 = vcmask 257024
    %124 = vst.msk [vmem:[#allocation7] sm:$0xf] %vm123, %v119
    %125 = vst.msk [vmem:[#allocation7 + $0x4] sm:$0xf] %vm123, %v120
    // Predicated region
    $region22: #{tpu_custom_call.1} parent=1 // pred_check
      _
    $region23: #{tpu_custom_call.1} parent=1 // pred_check_branch
      %127 = sbr.rel (0) target = $region25
    $region24: #{tpu_custom_call.1} parent=1 // pred_region
      %s129 = ssub.s32 128, 128
      %130 = vsyncadd [#allocation4], %s129
      %s131 = sshll.u32 [#allocation7], 4
      %s132 = int_to_ptr.vmem [resolvable:$true] %s131
      %137 = dma.vmem_to_hbm [thread:$0]  %s132, 128, %s3, [#allocation4], 64, 64, 4
    $region25: #{tpu_custom_call.1} parent=1 // pred_fallthru
      _
    // Predicated region
    $region26: #{tpu_custom_call.1} parent=1 // pred_check
      _
    $region27: #{tpu_custom_call.1} parent=1 // pred_check_branch
      %139 = sbr.rel (0) target = $region29
    $region28: #{tpu_custom_call.1} parent=1 // pred_region
      %140 = dma.done [#allocation4], 128
    $region29: #{tpu_custom_call.1} parent=1 // pred_fallthru
      _
    %141 = vsyncpa [#allocation3], 1
    %142 = vsyncpa [#allocation6], 1
    %143 = vsyncpa [#allocation4], 1

</llo_original>
